<compile_context>
chip_gen: v6e
topology: v6e:2x2x1
jax: 0.10.0
libtpu: 0.0.40
codegen_flags: <defaults>
</compile_context>

<pallas_src>
import functools

import numpy as np
import jax
import jax.numpy as jnp
from jax.experimental import pallas as pl
from jax.experimental.pallas import tpu as pltpu


# B-spline kernel sampled at integer offsets (-1, 0, +1).
_BSPLINE_INT_TAPS = {
    0: (0.0, 1.0, 0.0),                      # nearest
    1: (0.0, 1.0, 0.0),                      # linear (module default)
    2: (1.0 / 8.0, 3.0 / 4.0, 1.0 / 8.0),    # quadratic
    3: (1.0 / 6.0, 2.0 / 3.0, 1.0 / 6.0),    # cubic
}

_NAME_TO_ORDER = {'nearest': 0, 'linear': 1, 'quadratic': 2, 'cubic': 3}


def _coeff_to_value_kernel(coef_ref, x_ref, o_ref, *, h, w, t1):
    """Separable 3-tap conv (zero boundary) on a block of tb flattened slabs.

    x_ref/o_ref: (tb, H*W); each sublane row is one whole (H, W) slab
    flattened onto the lane axis (j = r*W + c).  coef_ref: (4, H*W) f32 with
    rows [c_up, c_dn, c_lf, c_rt]: the off-center tap value, zeroed at
    positions whose neighbour is outside the slab (zero boundary condition).
    Lane rolls wrap within each sublane row, so slabs never mix.
    """
    hw = h * w
    x = x_ref[...].astype(jnp.float32)

    # Conv along H: neighbour rows are +-W lanes away.
    if h > 1:
        x_up = pltpu.roll(x, w, axis=1)           # value from image row r-1
        x_dn = pltpu.roll(x, hw - w, axis=1)      # value from image row r+1
        t = t1 * x + coef_ref[0:1, :] * x_up + coef_ref[1:2, :] * x_dn
    else:
        t = t1 * x

    # Conv along W: neighbour columns are +-1 lane away.
    if w > 1:
        t_lf = pltpu.roll(t, 1, axis=1)           # value from column c-1
        t_rt = pltpu.roll(t, hw - 1, axis=1)      # value from column c+1
        y = t1 * t + coef_ref[2:3, :] * t_lf + coef_ref[3:4, :] * t_rt
    else:
        y = t1 * t

    o_ref[...] = y.astype(o_ref.dtype)


def _boundary_coefficients(h, w, t0):
    """(4, H*W) f32 host-precomputed coefficient vectors [c_up, c_dn, c_lf, c_rt].

    Entry j corresponds to flat position (r, c) = (j // w, j % w); the value is
    the off-center tap t0 when the neighbour in that direction is inside the
    slab, else 0 (zero boundary).
    """
    hw = h * w
    j = np.arange(hw)
    coef = np.zeros((4, hw), np.float32)
    coef[0] = np.where(j >= w, t0, 0.0)              # r-1 valid
    coef[1] = np.where(j < (h - 1) * w, t0, 0.0)     # r+1 valid
    coef[2] = np.where(j % w != 0, t0, 0.0)          # c-1 valid
    coef[3] = np.where(j % w != (w - 1), t0, 0.0)    # c+1 valid
    return coef


def _pick_num_slabs(n_slabs, hw):
    """Slabs per block (tb | n_slabs), sized on the *padded* VMEM footprint.

    Footprint per block is computed with rows rounded up to 8 sublanes, lanes
    rounded up to 128, in f32 (the in-kernel temporaries dominate).  Target
    ~2 MiB per block: with double-buffered in+out plus ~4 f32 temporaries this
    stays well under the 32 MiB scoped VMEM limit on v5e/v6e/v7x.  Among
    fitting candidates prefer an even grid-step count >= 4 (keeps both v7x
    TensorCores busy and double-buffered), then >= 2, then the largest block.
    Block sublane dims stay 8-aligned unless the block covers the whole axis.
    """
    target = 2 << 20
    lanes = ((hw + 127) // 128) * 128

    def padded_bytes(tb):
        return ((tb + 7) // 8) * 8 * lanes * 4

    divs = [d for d in range(1, n_slabs + 1) if n_slabs % d == 0]
    legal = [tb for tb in divs if (tb % 8 == 0) or (tb == n_slabs)]
    fits = [tb for tb in legal if padded_bytes(tb) <= target]

    def steps(tb):
        return n_slabs // tb

    for pred in (lambda tb: steps(tb) >= 4 and steps(tb) % 2 == 0,
                 lambda tb: steps(tb) >= 2,
                 lambda tb: True):
        cand = [tb for tb in fits if pred(tb)]
        if cand:
            return max(cand)

    # Nothing under target: fall back to the smallest legal block.
    # TODO(synk): per-slab tiling with halos for slabs too large for VMEM.
    return min(legal) if legal else n_slabs


class CoeffToValue:
    """Compute values from spline coefficients (Pallas TPU implementation)."""

    def __init__(self, interpolation='linear', bound='zero'):
        if interpolation == 'fd':
            interpolation = 1
        # TODO(synk): per-dimension interpolation/bound sequences not supported.
        order = _NAME_TO_ORDER.get(interpolation, interpolation)
        if int(order) not in _BSPLINE_INT_TAPS:
            # TODO(synk): orders > 3 need 5-tap integer B-spline weights.
            raise NotImplementedError(f"interpolation order {order}")
        if bound != 'zero':
            # TODO(synk): non-zero boundary conditions (dct2, replicate, ...) not implemented.
            raise NotImplementedError(f"bound {bound!r}")
        self.order = int(order)
        self.bound = bound

    def __call__(self, x):
        b, c, h, w = x.shape

        # Orders 0/1: taps are (0, 1, 0) -> exact identity.  No kernel launch.
        if self.order <= 1:
            return x

        t0, t1, _ = _BSPLINE_INT_TAPS[self.order]
        n = b * c
        hw = h * w
        tb = _pick_num_slabs(n, hw)

        coef = jnp.asarray(_boundary_coefficients(h, w, t0))
        xr = x.reshape(n, hw)
        kernel = functools.partial(_coeff_to_value_kernel, h=h, w=w, t1=t1)

        out = pl.pallas_call(
            kernel,
            out_shape=jax.ShapeDtypeStruct((n, hw), x.dtype),
            grid_spec=pltpu.PrefetchScalarGridSpec(
                num_scalar_prefetch=0,
                grid=(n // tb,),
                in_specs=[
                    pl.BlockSpec((4, hw), lambda i: (0, 0)),   # resident, fetched once
                    pl.BlockSpec((tb, hw), lambda i: (i, 0)),
                ],
                out_specs=pl.BlockSpec((tb, hw), lambda i: (i, 0)),
            ),
            compiler_params=pltpu.CompilerParams(
                dimension_semantics=("parallel",),
                vmem_limit_bytes=32 * 1024 * 1024,
            ),
        )(coef, xr)
        return out.reshape(b, c, h, w)


def _band_matrix(n, taps, dtype):
    """Tridiagonal matrix K with K[r, r-1]=taps[0], K[r,r]=taps[1], K[r,r+1]=taps[2]."""
    idx = jnp.arange(n)
    d = idx[:, None] - idx[None, :]          # row - col
    m = (taps[0] * (d == 1).astype(jnp.float32)
         + taps[1] * (d == 0).astype(jnp.float32)
         + taps[2] * (d == -1).astype(jnp.float32))
    return m.astype(dtype)


def _reference(x, order):
    """Pure-JAX reference: separable 3-tap conv with zero boundary."""
    taps = _BSPLINE_INT_TAPS[order]
    b, c, h, w = x.shape
    kh = _band_matrix(h, taps, jnp.float32)
    kw = _band_matrix(w, taps, jnp.float32)
    return jnp.einsum('hH,bcHW,wW->bchw', kh, x.astype(jnp.float32), kw).astype(x.dtype)


if __name__ == "__main__":
    key = jax.random.PRNGKey(0)
    x = jax.random.normal(key, (2, 4, 16, 16), dtype=jnp.float32)

    # Default module config (interpolation='linear'): exact identity, no kernel.
    mod_linear = CoeffToValue()                      # interpolation='linear', bound='zero'
    y_lin = jax.block_until_ready(mod_linear(x))
    assert y_lin.shape == x.shape and y_lin.dtype == x.dtype
    assert jnp.allclose(y_lin, x, atol=1e-6), "linear CoeffToValue must be identity"

    # Quadratic and cubic splines exercise the roll-based Pallas conv path.
    for order in (2, 3):
        mod = CoeffToValue(interpolation=order)
        y = jax.block_until_ready(mod(x))
        ref = _reference(x, order)
        assert y.shape == x.shape and y.dtype == x.dtype
        assert jnp.allclose(y, ref, atol=1e-5, rtol=1e-5), f"order {order} mismatch"

    print("KERNEL_OK")
</pallas_src>

<mosaic_0001>
module attributes {stable_mosaic.version = 11 : i64} {
  func.func @_coeff_to_value_kernel(%arg0: i32, %arg1: memref<4x256xf32, #tpu.memory_space<vmem>>, %arg2: memref<8x256xf32, #tpu.memory_space<vmem>>, %arg3: memref<8x256xf32, #tpu.memory_space<vmem>>) attributes {dimension_semantics = [#tpu.dimension_semantics<parallel>], iteration_bounds = array<i64: 1>, scalar_prefetch = 0 : i64, scratch_operands = 0 : i64, tpu.core_type = #tpu.core_type<tc>, window_params = [{pipeline_mode = #tpu.pipeline_mode<synchronous>, transform_indices = @transform_0, window_bounds = array<i64: 4, 256>}, {transform_indices = @transform_1, window_bounds = array<i64: 8, 256>}, {transform_indices = @transform_2, window_bounds = array<i64: 8, 256>}]} {
    %c0 = arith.constant 0 : index
    %c0_0 = arith.constant 0 : index
    %0 = vector.load %arg2[%c0, %c0_0] : memref<8x256xf32, #tpu.memory_space<vmem>>, vector<8x256xf32>
    %c16_i32 = arith.constant 16 : i32
    %1 = tpu.dynamic_rotate %0 by %c16_i32 dim 1 : vector<8x256xf32>, i32 -> vector<8x256xf32>
    %c240_i32 = arith.constant 240 : i32
    %2 = tpu.dynamic_rotate %0 by %c240_i32 dim 1 : vector<8x256xf32>, i32 -> vector<8x256xf32>
    %cst = arith.constant 7.500000e-01 : f32
    %3 = vector.broadcast %cst : f32 to vector<8x256xf32>
    %4 = arith.mulf %3, %0 : vector<8x256xf32>
    %c0_1 = arith.constant 0 : index
    %c0_2 = arith.constant 0 : index
    %5 = vector.load %arg1[%c0_1, %c0_2] : memref<4x256xf32, #tpu.memory_space<vmem>>, vector<1x256xf32>
    %6 = vector.broadcast %5 : vector<1x256xf32> to vector<8x256xf32>
    %7 = arith.mulf %6, %1 : vector<8x256xf32>
    %8 = arith.addf %4, %7 : vector<8x256xf32>
    %c1 = arith.constant 1 : index
    %c0_3 = arith.constant 0 : index
    %9 = vector.load %arg1[%c1, %c0_3] : memref<4x256xf32, #tpu.memory_space<vmem>>, vector<1x256xf32>
    %10 = vector.broadcast %9 : vector<1x256xf32> to vector<8x256xf32>
    %11 = arith.mulf %10, %2 : vector<8x256xf32>
    %12 = arith.addf %8, %11 : vector<8x256xf32>
    %c1_i32 = arith.constant 1 : i32
    %13 = tpu.dynamic_rotate %12 by %c1_i32 dim 1 : vector<8x256xf32>, i32 -> vector<8x256xf32>
    %c255_i32 = arith.constant 255 : i32
    %14 = tpu.dynamic_rotate %12 by %c255_i32 dim 1 : vector<8x256xf32>, i32 -> vector<8x256xf32>
    %cst_4 = arith.constant 7.500000e-01 : f32
    %15 = vector.broadcast %cst_4 : f32 to vector<8x256xf32>
    %16 = arith.mulf %15, %12 : vector<8x256xf32>
    %c2 = arith.constant 2 : index
    %c0_5 = arith.constant 0 : index
    %17 = vector.load %arg1[%c2, %c0_5] : memref<4x256xf32, #tpu.memory_space<vmem>>, vector<1x256xf32>
    %18 = vector.broadcast %17 : vector<1x256xf32> to vector<8x256xf32>
    %19 = arith.mulf %18, %13 : vector<8x256xf32>
    %20 = arith.addf %16, %19 : vector<8x256xf32>
    %c3 = arith.constant 3 : index
    %c0_6 = arith.constant 0 : index
    %21 = vector.load %arg1[%c3, %c0_6] : memref<4x256xf32, #tpu.memory_space<vmem>>, vector<1x256xf32>
    %22 = vector.broadcast %21 : vector<1x256xf32> to vector<8x256xf32>
    %23 = arith.mulf %22, %14 : vector<8x256xf32>
    %24 = arith.addf %20, %23 : vector<8x256xf32>
    %c0_7 = arith.constant 0 : index
    %c0_8 = arith.constant 0 : index
    %25 = vector.load %arg3[%c0_7, %c0_8] : memref<8x256xf32, #tpu.memory_space<vmem>>, vector<8x256xf32>
    tpu.vector_store %arg3[%c0_7, %c0_8], %24 {strides = array<i32>} : memref<8x256xf32, #tpu.memory_space<vmem>>, vector<8x256xf32>,
    return
  }
  func.func @transform_0(%arg0: i32) -> (i32, i32) {
    %c0_i32 = arith.constant 0 : i32
    %c0_i32_0 = arith.constant 0 : i32
    %c0_i32_1 = arith.constant 0 : i32
    return %c0_i32, %c0_i32_0 : i32, i32
  }
  func.func @transform_1(%arg0: i32) -> (i32, i32) {
    %c0_i32 = arith.constant 0 : i32
    %c0_i32_0 = arith.constant 0 : i32
    return %arg0, %c0_i32 : i32, i32
  }
  func.func @transform_2(%arg0: i32) -> (i32, i32) {
    %c0_i32 = arith.constant 0 : i32
    %c0_i32_0 = arith.constant 0 : i32
    return %arg0, %c0_i32 : i32, i32
  }
}

</mosaic_0001>

<llo_original>
// kernel: tpu_custom_call.1
$region0: #{tpu_custom_call.1}
  #allocation0 [shape = 'u32[]', space=smem, size = 0x4, offset = 0x4, fixed_abs, tag = 'smem constant byte address 0x4 - core index']
  #allocation1 [shape = 'u32[144,128]{1,0:T(1,128)}', space=vmem, size = 0x12000, scoped, tag = 'internal scratch']
  %s0 = inlined_call_operand.hbm [shape: f32[4,256], index: 0, kind: input, shape index: {}]
  %s1 = inlined_call_operand.hbm [shape: f32[8,256], index: 1, kind: input, shape index: {}]
  %s2 = inlined_call_operand.hbm [shape: f32[8,256], index: 2, kind: output, shape index: {}]
  %s3 = sld [smem:[#allocation0]]
  $region26: #{tpu_custom_call.1} parent=0
    _
  %s5 = ssub.s32 1, %s3
  %s6 = scalar_select 0, %s5, %s3
  $region1: #{tpu_custom_call.1} parent=0
    #allocation2 [shape = 'u8[4096]{0}', space=vmem, size = 0x1000, scoped, tag = 'input window, operand 0, single buffered']
    #allocation3 [shape = 's32[1]{0}', space=sflag, size = 0x4, scoped, tag = 'scoped memory for tpu_custom_call.1']
    #allocation4 [shape = 's32[1]{0}', space=sflag, size = 0x4, scoped, tag = 'scoped memory for tpu_custom_call.1']
    #allocation5 [shape = 'u8[8192]{0}', space=vmem, size = 0x2000, scoped, tag = 'input window, operand 1, single buffered']
    #allocation6 [shape = 's32[1]{0}', space=sflag, size = 0x4, scoped, tag = 'scoped memory for tpu_custom_call.1']
    #allocation7 [shape = 'u8[8192]{0}', space=vmem, size = 0x2000, scoped, tag = 'output window, operand 0, single buffered']
    %7 = vsyncpa [#allocation3], 0
    %8 = vsyncpa [#allocation6], 0
    %9 = vsyncpa [#allocation4], 0
    // Predicated region
    $region2: #{tpu_custom_call.1} parent=1 // pred_check
      _
    $region3: #{tpu_custom_call.1} parent=1 // pred_check_branch
      %11 = sbr.rel (0) target = $region5
    $region4: #{tpu_custom_call.1} parent=1 // pred_region
      %s13 = ssub.s32 128, 128
      %14 = vsyncadd [#allocation3], %s13
      %s16 = sshll.u32 [#allocation2], 4
      %s17 = int_to_ptr.vmem [resolvable:$true] %s16
      %19 = dma.hbm_to_vmem [thread:$0]  %s0, 128, %s17, [#allocation3]
    $region5: #{tpu_custom_call.1} parent=1 // pred_fallthru
      _
    // Predicated region
    $region6: #{tpu_custom_call.1} parent=1 // pred_check
      _
    $region7: #{tpu_custom_call.1} parent=1 // pred_check_branch
      %21 = sbr.rel (0) target = $region9
    $region8: #{tpu_custom_call.1} parent=1 // pred_region
      %s23 = ssub.s32 256, 256
      %24 = vsyncadd [#allocation6], %s23
      %s26 = sshll.u32 [#allocation5], 4
      %s27 = int_to_ptr.vmem [resolvable:$true] %s26
      %29 = dma.hbm_to_vmem [thread:$0]  %s1, 256, %s27, [#allocation6]
    $region9: #{tpu_custom_call.1} parent=1 // pred_fallthru
      _
    // Predicated region
    $region10: #{tpu_custom_call.1} parent=1 // pred_check
      _
    $region11: #{tpu_custom_call.1} parent=1 // pred_check_branch
      %31 = sbr.rel (0) target = $region13
    $region12: #{tpu_custom_call.1} parent=1 // pred_region
      %32 = dma.done [#allocation3], 128
    $region13: #{tpu_custom_call.1} parent=1 // pred_fallthru
      _
    // Predicated region
    $region14: #{tpu_custom_call.1} parent=1 // pred_check
      _
    $region15: #{tpu_custom_call.1} parent=1 // pred_check_branch
      %34 = sbr.rel (0) target = $region17
    $region16: #{tpu_custom_call.1} parent=1 // pred_region
      %35 = dma.done [#allocation6], 256
    $region17: #{tpu_custom_call.1} parent=1 // pred_fallthru
      _
    %v36 = vld [vmem:[#allocation5] sm:$0xff]
    %v37 = vld [vmem:[#allocation5 + $0x8] sm:$0xff]
    %38 = vrot.lane.b32.xlu0 %v36, 16
    %v39 = vpop.permute.xlu0 %38
    %40 = vrot.lane.b32.xlu0 %v37, 16
    %v41 = vpop.permute.xlu0 %40
    %v42 = vlaneseq
    %v43 = vand.u32 %v42, 127
    %vm44 = vcmp.lt.s32.totalorder %v43, 16
    %v45 = vsel %vm44, %v39, %v41
    %v46 = vsel %vm44, %v41, %v39
    %47 = vrot.lane.b32.xlu0 %v36, 112
    %v48 = vpop.permute.xlu0 %47
    %49 = vrot.lane.b32.xlu0 %v37, 112
    %v50 = vpop.permute.xlu0 %49
    %vm51 = vcmp.lt.s32.totalorder %v43, 112
    %v52 = vsel %vm51, %v48, %v50
    %v53 = vsel %vm51, %v50, %v48
    %v54 = vmul.f32 %v36, 0.75
    %v55 = vmul.f32 %v37, 0.75
    %v56 = vld [vmem:[#allocation2] ss:$4 sm:$0x3]
    %v58 = vlaneseq
    %v59 = vshrl.u32 %v58, 7
    %v60 = vsub.s32 0, %v59
    %v61 = vrot.slane %v56, %v60
    %v62 = vlaneseq
    %v63 = vshrl.u32 %v62, 7
    %v64 = vsub.s32 1, %v63
    %v65 = vrot.slane %v56, %v64
    %v68 = vmul.f32 %v61, %v46
    %v69 = vmul.f32 %v65, %v45
    %v70 = vadd.f32 %v54, %v68
    %v71 = vadd.f32 %v55, %v69
    %s72 = scalar_lea.vmem [#allocation2], 1
    %v73 = vld [vmem:[%s72] ss:$4 sm:$0x3]
    %v75 = vlaneseq
    %v76 = vshrl.u32 %v75, 7
    %v77 = vsub.s32 0, %v76
    %v78 = vrot.slane %v73, %v77
    %v79 = vlaneseq
    %v80 = vshrl.u32 %v79, 7
    %v81 = vsub.s32 1, %v80
    %v82 = vrot.slane %v73, %v81
    %v85 = vmul.f32 %v78, %v52
    %v86 = vmul.f32 %v82, %v53
    %v87 = vadd.f32 %v70, %v85
    %v88 = vadd.f32 %v71, %v86
    %89 = vrot.lane.b32.xlu0 %v87, 1
    %v90 = vpop.permute.xlu0 %89
    %91 = vrot.lane.b32.xlu0 %v88, 1
    %v92 = vpop.permute.xlu0 %91
    %vm93 = vcmp.lt.s32.totalorder %v43, 1
    %v94 = vsel %vm93, %v90, %v92
    %v95 = vsel %vm93, %v92, %v90
    %96 = vrot.lane.b32.xlu0 %v87, 127
    %v97 = vpop.permute.xlu0 %96
    %98 = vrot.lane.b32.xlu0 %v88, 127
    %v99 = vpop.permute.xlu0 %98
    %vm100 = vcmp.lt.s32.totalorder %v43, 127
    %v101 = vsel %vm100, %v97, %v99
    %v102 = vsel %vm100, %v99, %v97
    %v103 = vmul.f32 %v87, 0.75
    %v104 = vmul.f32 %v88, 0.75
    %s105 = scalar_lea.vmem [#allocation2], 2
    %v106 = vld [vmem:[%s105] ss:$4 sm:$0x3]
    %v108 = vlaneseq
    %v109 = vshrl.u32 %v108, 7
    %v110 = vsub.s32 0, %v109
    %v111 = vrot.slane %v106, %v110
    %v112 = vlaneseq
    %v113 = vshrl.u32 %v112, 7
    %v114 = vsub.s32 1, %v113
    %v115 = vrot.slane %v106, %v114
    %v118 = vmul.f32 %v111, %v95
    %v119 = vmul.f32 %v115, %v94
    %v120 = vadd.f32 %v103, %v118
    %v121 = vadd.f32 %v104, %v119
    %s122 = scalar_lea.vmem [#allocation2], 3
    %v123 = vld [vmem:[%s122] ss:$4 sm:$0x3]
    %v125 = vlaneseq
    %v126 = vshrl.u32 %v125, 7
    %v127 = vsub.s32 0, %v126
    %v128 = vrot.slane %v123, %v127
    %v129 = vlaneseq
    %v130 = vshrl.u32 %v129, 7
    %v131 = vsub.s32 1, %v130
    %v132 = vrot.slane %v123, %v131
    %v135 = vmul.f32 %v128, %v101
    %v136 = vmul.f32 %v132, %v102
    %v137 = vadd.f32 %v120, %v135
    %v138 = vadd.f32 %v121, %v136
    %139 = vst [vmem:[#allocation7] sm:$0xff] %v137
    %140 = vst [vmem:[#allocation7 + $0x8] sm:$0xff] %v138
    // Predicated region
    $region18: #{tpu_custom_call.1} parent=1 // pred_check
      _
    $region19: #{tpu_custom_call.1} parent=1 // pred_check_branch
      %142 = sbr.rel (0) target = $region21
    $region20: #{tpu_custom_call.1} parent=1 // pred_region
      %s144 = ssub.s32 256, 256
      %145 = vsyncadd [#allocation4], %s144
      %s147 = sshll.u32 [#allocation7], 4
      %s148 = int_to_ptr.vmem [resolvable:$true] %s147
      %150 = dma.vmem_to_hbm [thread:$0]  %s148, 256, %s2, [#allocation4]
    $region21: #{tpu_custom_call.1} parent=1 // pred_fallthru
      _
    // Predicated region
    $region22: #{tpu_custom_call.1} parent=1 // pred_check
      _
    $region23: #{tpu_custom_call.1} parent=1 // pred_check_branch
      %152 = sbr.rel (0) target = $region25
    $region24: #{tpu_custom_call.1} parent=1 // pred_region
      %153 = dma.done [#allocation4], 256
    $region25: #{tpu_custom_call.1} parent=1 // pred_fallthru
      _
    %154 = vsyncpa [#allocation3], 1
    %155 = vsyncpa [#allocation6], 1
    %156 = vsyncpa [#allocation4], 1

</llo_original>
